<compile_context>
chip_gen: v7x
topology: tpu7x:2x2x1
jax: 0.10.0
libtpu: 0.0.40
codegen_flags: <defaults>
</compile_context>

<pallas_src>
import functools

import jax
import jax.numpy as jnp
import numpy as np
from jax import lax
from jax.experimental import pallas as pl
from jax.experimental.pallas import tpu as pltpu

EPS = 1e-5
PLANES = 256
# Scoped-VMEM budget: above the 16/32 MiB scoped defaults on v5e/v6e, with
# headroom below v7x's 64 MiB physical VMEM.
VMEM_LIMIT_BYTES = 48 * 1024 * 1024


def _pick_tile_h(H, W):
    """Row-tile height: ~128 output rows per tile (good MXU row fill), dividing H."""
    target = max(1, 128 // max(W, 1))
    for th in range(min(target, H), 0, -1):
        if H % th == 0:
            return th
    return H


# ----------------------------------------------------------------------------
# Fused ASPP kernel: all branches + final 1x1 conv for one (batch, row-tile).
# ----------------------------------------------------------------------------
def _fused_aspp_kernel(*refs, branch_meta, TH, W, maxpad):
    """refs layout:
       [0]                 xw_ref   : (1, 1, TH+2*maxpad, W+2*maxpad, Cin) f32
       [1+3b], [2+3b], [3+3b] per branch b:
                           wmat_b   : (K*K*Cin, 256) bf16  (branch BN scale folded)
                           bias_b   : (1, 256)       f32   (branch BN bias)
                           wf_b     : (256, 256)     bf16  (final-conv slice, final BN scale folded)
       [1+3*nb]            bb_ref   : (1, 1, 256)    f32   (final BN bias + GAP contribution)
       [2+3*nb]            o_ref    : (1, TH, W, 256)
    """
    nb = len(branch_meta)
    xw_ref = refs[0]
    bb_ref = refs[1 + 3 * nb]
    o_ref = refs[2 + 3 * nb]
    Cin = xw_ref.shape[-1]
    Cout = o_ref.shape[-1]

    acc = jnp.zeros((TH * W, Cout), jnp.float32)
    for b, (K, dil) in enumerate(branch_meta):
        wmat_ref = refs[1 + 3 * b]
        bias_ref = refs[2 + 3 * b]
        wf_ref = refs[3 + 3 * b]
        off = maxpad - dil * (K - 1) // 2

        # Stack the K*K shifted taps along the contraction axis -> one MXU call
        # with contraction = K*K*Cin instead of K*K small dots.
        parts = []
        for ky in range(K):
            for kx in range(K):
                oy = off + ky * dil
                ox = off + kx * dil
                tap = xw_ref[0, 0, oy:oy + TH, ox:ox + W, :]     # (TH, W, Cin)
                parts.append(tap.reshape(TH * W, Cin))
        patch = parts[0] if len(parts) == 1 else jnp.concatenate(parts, axis=-1)
        patch = patch.astype(jnp.bfloat16)                        # (TH*W, K*K*Cin)

        conv = jnp.dot(patch, wmat_ref[...],
                       preferred_element_type=jnp.float32)        # (TH*W, 256) f32
        h = jnp.maximum(conv + bias_ref[...], 0.0)                # branch BN + ReLU
        # Partial product of the (fused) final 1x1 conv for this branch slice.
        acc = acc + jnp.dot(h.astype(jnp.bfloat16), wf_ref[...],
                            preferred_element_type=jnp.float32)

    out = jnp.maximum(acc + bb_ref[0], 0.0)                       # final BN bias(+GAP) + ReLU
    o_ref[...] = out.reshape(1, TH, W, Cout).astype(o_ref.dtype)


def fused_aspp(x_windows, wmats, bvecs, wfs, batch_bias, branch_meta, *,
               TH, H, W, maxpad, out_dtype):
    """x_windows: (N, nrows, TH+2p, W+2p, Cin);  batch_bias: (N, 1, 256)."""
    N, nrows, THp, Wp, Cin = x_windows.shape
    Cout = PLANES
    kernel = functools.partial(_fused_aspp_kernel,
                               branch_meta=tuple(branch_meta),
                               TH=TH, W=W, maxpad=maxpad)

    in_specs = [pl.BlockSpec((1, 1, THp, Wp, Cin), lambda n, i: (n, i, 0, 0, 0))]
    inputs = [x_windows]
    for wm, bv, wf in zip(wmats, bvecs, wfs):
        in_specs.append(pl.BlockSpec(wm.shape, lambda n, i: (0, 0)))
        in_specs.append(pl.BlockSpec(bv.shape, lambda n, i: (0, 0)))
        in_specs.append(pl.BlockSpec(wf.shape, lambda n, i: (0, 0)))
        inputs += [wm, bv, wf]
    in_specs.append(pl.BlockSpec((1, 1, Cout), lambda n, i: (n, 0, 0)))
    inputs.append(batch_bias)

    return pl.pallas_call(
        kernel,
        out_shape=jax.ShapeDtypeStruct((N, H, W, Cout), out_dtype),
        grid=(N, nrows),
        in_specs=in_specs,
        out_specs=pl.BlockSpec((1, TH, W, Cout), lambda n, i: (n, i, 0, 0)),
        compiler_params=pltpu.CompilerParams(
            dimension_semantics=("parallel", "parallel"),
            vmem_limit_bytes=VMEM_LIMIT_BYTES),
    )(*inputs)


# ----------------------------------------------------------------------------
# Global-average-pool branch: chunked reduction + 1x1 conv + BN + ReLU.
# ----------------------------------------------------------------------------
def _gap_kernel(x_ref, w_ref, scale_ref, bias_ref, o_ref, acc_ref, *, inv_hw):
    c = pl.program_id(1)

    @pl.when(c == 0)
    def _():
        acc_ref[...] = jnp.zeros_like(acc_ref)

    x = x_ref[...].astype(jnp.float32)                         # (1, TH, W, Cin)
    x2 = x.reshape(-1, x.shape[-1])                            # (TH*W, Cin)
    acc_ref[...] += jnp.sum(x2, axis=0, keepdims=True)         # (1, Cin)

    @pl.when(c == pl.num_programs(1) - 1)
    def _():
        pooled = acc_ref[...] * inv_hw                         # (1, Cin)
        out = jnp.dot(pooled.astype(jnp.bfloat16), w_ref[...],
                      preferred_element_type=jnp.float32)      # (1, 256)
        out = out * scale_ref[...] + bias_ref[...]
        o_ref[...] = jnp.maximum(out, 0.0).reshape(o_ref.shape).astype(o_ref.dtype)


def gap_conv_bn_relu(x_nhwc, w_bf16, scale, bias, *, TH):
    """x: (N,H,W,Cin), w: (Cin,256) bf16 -> (N,256) f32."""
    N, H, W, Cin = x_nhwc.shape
    Cout = w_bf16.shape[-1]
    nchunks = H // TH
    kernel = functools.partial(_gap_kernel, inv_hw=1.0 / float(H * W))
    out = pl.pallas_call(
        kernel,
        out_shape=jax.ShapeDtypeStruct((N, 1, Cout), jnp.float32),
        grid=(N, nchunks),
        in_specs=[
            pl.BlockSpec((1, TH, W, Cin), lambda n, c: (n, c, 0, 0)),
            pl.BlockSpec((Cin, Cout), lambda n, c: (0, 0)),
            pl.BlockSpec((1, Cout), lambda n, c: (0, 0)),
            pl.BlockSpec((1, Cout), lambda n, c: (0, 0)),
        ],
        out_specs=pl.BlockSpec((1, 1, Cout), lambda n, c: (n, 0, 0)),
        scratch_shapes=[pltpu.VMEM((1, Cin), jnp.float32)],
        compiler_params=pltpu.CompilerParams(
            dimension_semantics=("parallel", "arbitrary"),
            vmem_limit_bytes=VMEM_LIMIT_BYTES),
    )(x_nhwc, w_bf16, scale, bias)
    return out[:, 0, :]


# ----------------------------------------------------------------------------
# ASPP parameters + forward
# ----------------------------------------------------------------------------
def _kaiming(key, k, cin, cout):
    # torch.nn.init.kaiming_normal_ default: fan_in, gain=sqrt(2)
    fan_in = cin * k * k
    std = (2.0 / fan_in) ** 0.5
    return jax.random.normal(key, (k, k, cin, cout), jnp.float32) * std


def _bn_params(cout):
    # gamma=1, beta=0, running_mean=0, running_var=1 (fresh nn.BatchNorm2d)
    scale = jnp.full((1, cout), 1.0 / np.sqrt(1.0 + EPS), jnp.float32)
    bias = jnp.zeros((1, cout), jnp.float32)
    return scale, bias


def init_aspp_params(key, inplanes, dilations, use_gap=True):
    params = {"branches": []}
    keys = jax.random.split(key, len(dilations) + 2)
    # branch 0: 1x1 conv
    s, b = _bn_params(PLANES)
    params["branches"].append(dict(w=_kaiming(keys[0], 1, inplanes, PLANES),
                                   scale=s, bias=b, K=1, dil=1))
    # remaining branches: 3x3 dilated convs
    for i, dil in enumerate(dilations[1:]):
        s, b = _bn_params(PLANES)
        params["branches"].append(dict(w=_kaiming(keys[i + 1], 3, inplanes, PLANES),
                                       scale=s, bias=b, K=3, dil=int(dil)))
    num_mod = len(dilations)
    if use_gap:
        s, b = _bn_params(PLANES)
        params["gap"] = dict(w=_kaiming(keys[-2], 1, inplanes, PLANES)[0, 0],  # (Cin, 256)
                             scale=s, bias=b)
        num_mod += 1
    s, b = _bn_params(PLANES)
    params["final"] = dict(w=_kaiming(keys[-1], 1, PLANES * num_mod, PLANES),
                           scale=s, bias=b)
    return params


def aspp_forward(x_nchw, params, use_gap=True):
    x = jnp.transpose(x_nchw, (0, 2, 3, 1)).astype(jnp.float32)   # NCHW -> NHWC
    N, H, W, Cin = x.shape

    branch_meta = [(p["K"], p["dil"]) for p in params["branches"]]
    nb = len(branch_meta)
    maxpad = max(dil * (K - 1) // 2 for K, dil in branch_meta)
    TH = _pick_tile_h(H, W)
    nrows = H // TH

    # Shared zero-padded input (single pad for every dilated branch) and
    # pre-gathered halo'd row windows so BlockSpec tiles don't overlap.
    xpad = jnp.pad(x, ((0, 0), (maxpad, maxpad), (maxpad, maxpad), (0, 0)))
    x_windows = jnp.stack(
        [xpad[:, i * TH:i * TH + TH + 2 * maxpad] for i in range(nrows)], axis=1)

    # Fold BN scales into weights; bf16 matmul operands, f32 biases.
    fw = params["final"]["w"].reshape(-1, PLANES)                 # (256*num_mod, 256)
    wf_scaled = fw * params["final"]["scale"]                     # final BN scale folded
    fbias = params["final"]["bias"]                               # (1, 256)

    wmats, bvecs, wfs = [], [], []
    for b, p in enumerate(params["branches"]):
        K = p["K"]
        w_s = (p["w"] * p["scale"][0]).reshape(K * K * Cin, PLANES)
        wmats.append(w_s.astype(jnp.bfloat16))
        bvecs.append(p["bias"].astype(jnp.float32))
        wfs.append(wf_scaled[b * PLANES:(b + 1) * PLANES].astype(jnp.bfloat16))

    # Per-batch bias row: final BN bias (+ GAP branch, which is spatially
    # constant after the align_corners=True bilinear upsample from 1x1).
    if use_gap:
        gp = params["gap"]
        gap_vec = gap_conv_bn_relu(x, gp["w"].astype(jnp.bfloat16),
                                   gp["scale"], gp["bias"], TH=TH)          # (N, 256)
        wf_gap = wf_scaled[nb * PLANES:(nb + 1) * PLANES]                   # (256, 256)
        batch_bias = fbias + gap_vec @ wf_gap
    else:
        batch_bias = jnp.broadcast_to(fbias, (N, PLANES))
    batch_bias = batch_bias.reshape(N, 1, PLANES).astype(jnp.float32)

    out = fused_aspp(x_windows, wmats, bvecs, wfs, batch_bias, branch_meta,
                     TH=TH, H=H, W=W, maxpad=maxpad, out_dtype=x_nchw.dtype)
    return jnp.transpose(out, (0, 3, 1, 2))                       # NHWC -> NCHW


# ----------------------------------------------------------------------------
# Pure-JAX reference (f32, scoped HIGHEST precision) for correctness check.
# ----------------------------------------------------------------------------
def _ref_conv(x, w, K, dil):
    pad = dil * (K - 1) // 2
    return lax.conv_general_dilated(
        x, w, window_strides=(1, 1), padding=((pad, pad), (pad, pad)),
        rhs_dilation=(dil, dil), dimension_numbers=("NHWC", "HWIO", "NHWC"),
        precision=lax.Precision.HIGHEST)


def aspp_reference(x_nchw, params, use_gap=True):
    x = jnp.transpose(x_nchw, (0, 2, 3, 1)).astype(jnp.float32)
    N, H, W, _ = x.shape
    branches = []
    for p in params["branches"]:
        y = _ref_conv(x, p["w"], p["K"], p["dil"])
        y = jnp.maximum(y * p["scale"][0] + p["bias"][0], 0.0)
        branches.append(y)
    if use_gap:
        gp = params["gap"]
        pooled = jnp.mean(x, axis=(1, 2))                          # (N, Cin)
        y = jnp.matmul(pooled, gp["w"], precision=lax.Precision.HIGHEST)
        y = jnp.maximum(y * gp["scale"][0] + gp["bias"][0], 0.0)
        branches.append(jnp.broadcast_to(y[:, None, None, :], (N, H, W, y.shape[-1])))
    cat = jnp.concatenate(branches, axis=-1)
    fp = params["final"]
    out = _ref_conv(cat, fp["w"], 1, 1)
    out = jnp.maximum(out * fp["scale"][0] + fp["bias"][0], 0.0)
    return jnp.transpose(out, (0, 3, 1, 2))


# ----------------------------------------------------------------------------
if __name__ == "__main__":
    key = jax.random.PRNGKey(0)
    k_x, k_p = jax.random.split(key)

    N, C_IN, H, W = 2, 8, 16, 16
    DILATIONS = [1, 2, 3]

    x = jax.random.normal(k_x, (N, C_IN, H, W), jnp.float32)      # NCHW like PyTorch
    params = init_aspp_params(k_p, C_IN, DILATIONS, use_gap=True)

    out = aspp_forward(x, params, use_gap=True)
    out = jax.block_until_ready(out)
    assert out.shape == (N, 256, H, W), out.shape

    ref = jax.block_until_ready(aspp_reference(x, params, use_gap=True))
    # Kernel uses bf16 MXU inputs with f32 accumulation (native TPU matmul
    # path); reference is full f32 (HIGHEST), hence the 2e-2 tolerance.
    np.testing.assert_allclose(np.asarray(out), np.asarray(ref), rtol=2e-2, atol=2e-2)

    print("KERNEL_OK")
</pallas_src>

<mosaic_0001>
module attributes {stable_mosaic.version = 11 : i64} {
  func.func @_gap_kernel(%arg0: i32, %arg1: i32, %arg2: memref<1x8x16x8xf32, #tpu.memory_space<vmem>>, %arg3: memref<8x256xbf16, #tpu.memory_space<vmem>>, %arg4: memref<1x256xf32, #tpu.memory_space<vmem>>, %arg5: memref<1x256xf32, #tpu.memory_space<vmem>>, %arg6: memref<1x1x256xf32, #tpu.memory_space<vmem>>, %arg7: memref<1x8xf32, #tpu.memory_space<vmem>>) attributes {dimension_semantics = [#tpu.dimension_semantics<parallel>, #tpu.dimension_semantics<arbitrary>], iteration_bounds = array<i64: 2, 2>, scalar_prefetch = 0 : i64, scratch_operands = 1 : i64, tpu.core_type = #tpu.core_type<tc>, window_params = [{transform_indices = @transform_0, window_bounds = array<i64: 1, 8, 16, 8>}, {pipeline_mode = #tpu.pipeline_mode<synchronous>, transform_indices = @transform_1, window_bounds = array<i64: 8, 256>}, {pipeline_mode = #tpu.pipeline_mode<synchronous>, transform_indices = @transform_2, window_bounds = array<i64: 1, 256>}, {pipeline_mode = #tpu.pipeline_mode<synchronous>, transform_indices = @transform_3, window_bounds = array<i64: 1, 256>}, {transform_indices = @transform_4, window_bounds = array<i64: 1, 1, 256>}]} {
    %c0_i32 = arith.constant 0 : i32
    %0 = arith.cmpi eq, %arg1, %c0_i32 : i32
    %1 = arith.extui %0 : i1 to i32
    %c0_i32_0 = arith.constant 0 : i32
    %2 = arith.cmpi ne, %1, %c0_i32_0 : i32
    scf.if %2 {
      %cst_9 = arith.constant 0.000000e+00 : f32
      %13 = vector.broadcast %cst_9 : f32 to vector<1x8xf32>
      %c0_10 = arith.constant 0 : index
      %c0_11 = arith.constant 0 : index
      %14 = vector.load %arg7[%c0_10, %c0_11] : memref<1x8xf32, #tpu.memory_space<vmem>>, vector<1x8xf32>
      tpu.vector_store %arg7[%c0_10, %c0_11], %13 {strides = array<i32>} : memref<1x8xf32, #tpu.memory_space<vmem>>, vector<1x8xf32>,
    } else {
    }
    %c0 = arith.constant 0 : index
    %c0_1 = arith.constant 0 : index
    %c0_2 = arith.constant 0 : index
    %c0_3 = arith.constant 0 : index
    %3 = vector.load %arg2[%c0, %c0_1, %c0_2, %c0_3] : memref<1x8x16x8xf32, #tpu.memory_space<vmem>>, vector<1x8x16x8xf32>
    %4 = vector.shape_cast %3 : vector<1x8x16x8xf32> to vector<128x8xf32>
    %c0_4 = arith.constant 0 : index
    %c0_5 = arith.constant 0 : index
    %5 = vector.load %arg7[%c0_4, %c0_5] : memref<1x8xf32, #tpu.memory_space<vmem>>, vector<1x8xf32>
    %cst = arith.constant dense<0.000000e+00> : vector<8xf32>
    %6 = vector.multi_reduction <add>, %4, %cst [0] : vector<128x8xf32> to vector<8xf32>
    %7 = vector.shape_cast %6 : vector<8xf32> to vector<1x8xf32>
    %8 = arith.addf %5, %7 : vector<1x8xf32>
    %c0_6 = arith.constant 0 : index
    %c0_7 = arith.constant 0 : index
    %9 = vector.load %arg7[%c0_6, %c0_7] : memref<1x8xf32, #tpu.memory_space<vmem>>, vector<1x8xf32>
    tpu.vector_store %arg7[%c0_6, %c0_7], %8 {strides = array<i32>} : memref<1x8xf32, #tpu.memory_space<vmem>>, vector<1x8xf32>,
    %c1_i32 = arith.constant 1 : i32
    %10 = arith.cmpi eq, %arg1, %c1_i32 : i32
    %11 = arith.extui %10 : i1 to i32
    %c0_i32_8 = arith.constant 0 : i32
    %12 = arith.cmpi ne, %11, %c0_i32_8 : i32
    scf.if %12 {
      %c0_9 = arith.constant 0 : index
      %c0_10 = arith.constant 0 : index
      %13 = vector.load %arg7[%c0_9, %c0_10] : memref<1x8xf32, #tpu.memory_space<vmem>>, vector<1x8xf32>
      %cst_11 = arith.constant 3.906250e-03 : f32
      %14 = vector.broadcast %cst_11 : f32 to vector<1x8xf32>
      %15 = arith.mulf %13, %14 : vector<1x8xf32>
      %16 = arith.truncf %15 : vector<1x8xf32> to vector<1x8xbf16>
      %c0_12 = arith.constant 0 : index
      %c0_13 = arith.constant 0 : index
      %17 = vector.load %arg3[%c0_12, %c0_13] : memref<8x256xbf16, #tpu.memory_space<vmem>>, vector<8x256xbf16>
      %cst_14 = arith.constant dense<0.000000e+00> : vector<1x256xf32>
      %18 = tpu.matmul %16, %17, %cst_14 {dimension_numbers = #tpu.dot_dimension_numbers<[1], [0], [0], [1], [0, 0, 1, 1], [], []>} : vector<1x8xbf16>, vector<8x256xbf16>, vector<1x256xf32> -> vector<1x256xf32>
      %c0_15 = arith.constant 0 : index
      %c0_16 = arith.constant 0 : index
      %19 = vector.load %arg4[%c0_15, %c0_16] : memref<1x256xf32, #tpu.memory_space<vmem>>, vector<1x256xf32>
      %20 = arith.mulf %18, %19 : vector<1x256xf32>
      %c0_17 = arith.constant 0 : index
      %c0_18 = arith.constant 0 : index
      %21 = vector.load %arg5[%c0_17, %c0_18] : memref<1x256xf32, #tpu.memory_space<vmem>>, vector<1x256xf32>
      %22 = arith.addf %20, %21 : vector<1x256xf32>
      %cst_19 = arith.constant 0.000000e+00 : f32
      %23 = vector.broadcast %cst_19 : f32 to vector<1x256xf32>
      %24 = arith.maximumf %22, %23 : vector<1x256xf32>
      %25 = vector.shape_cast %24 : vector<1x256xf32> to vector<1x1x256xf32>
      %c0_20 = arith.constant 0 : index
      %c0_21 = arith.constant 0 : index
      %c0_22 = arith.constant 0 : index
      %26 = vector.load %arg6[%c0_20, %c0_21, %c0_22] : memref<1x1x256xf32, #tpu.memory_space<vmem>>, vector<1x1x256xf32>
      tpu.vector_store %arg6[%c0_20, %c0_21, %c0_22], %25 {strides = array<i32>} : memref<1x1x256xf32, #tpu.memory_space<vmem>>, vector<1x1x256xf32>,
    } else {
    }
    return
  }
  func.func @transform_0(%arg0: i32, %arg1: i32) -> (i32, i32, i32, i32) {
    %c0_i32 = arith.constant 0 : i32
    %c0_i32_0 = arith.constant 0 : i32
    %c0_i32_1 = arith.constant 0 : i32
    return %arg0, %arg1, %c0_i32, %c0_i32_0 : i32, i32, i32, i32
  }
  func.func @transform_1(%arg0: i32, %arg1: i32) -> (i32, i32) {
    %c0_i32 = arith.constant 0 : i32
    %c0_i32_0 = arith.constant 0 : i32
    %c0_i32_1 = arith.constant 0 : i32
    return %c0_i32, %c0_i32_0 : i32, i32
  }
  func.func @transform_2(%arg0: i32, %arg1: i32) -> (i32, i32) {
    %c0_i32 = arith.constant 0 : i32
    %c0_i32_0 = arith.constant 0 : i32
    %c0_i32_1 = arith.constant 0 : i32
    return %c0_i32, %c0_i32_0 : i32, i32
  }
  func.func @transform_3(%arg0: i32, %arg1: i32) -> (i32, i32) {
    %c0_i32 = arith.constant 0 : i32
    %c0_i32_0 = arith.constant 0 : i32
    %c0_i32_1 = arith.constant 0 : i32
    return %c0_i32, %c0_i32_0 : i32, i32
  }
  func.func @transform_4(%arg0: i32, %arg1: i32) -> (i32, i32, i32) {
    %c0_i32 = arith.constant 0 : i32
    %c0_i32_0 = arith.constant 0 : i32
    %c0_i32_1 = arith.constant 0 : i32
    return %arg0, %c0_i32, %c0_i32_0 : i32, i32, i32
  }
}

</mosaic_0001>

<llo_original>
// kernel: tpu_custom_call.1
$region0: #{tpu_custom_call.1}
  #allocation0 [shape = 'u32[]', space=smem, size = 0x4, offset = 0x4, fixed_abs, tag = 'smem constant byte address 0x4 - core index']
  #allocation1 [shape = 'u32[144,128]{1,0:T(1,128)}', space=vmem, size = 0x12000, scoped, tag = 'internal scratch']
  #allocation2 [shape = 'f32[1,8]{1,0:T(1,128)}', space=vmem, size = 0x200, scoped, tag = 'scratch operand']
  %s0 = inlined_call_operand.vmem [shape: f32[2,16,16,8], index: 0, kind: input, shape index: {}]
  %s1 = inlined_call_operand.vmem [shape: bf16[8,256], index: 1, kind: input, shape index: {}]
  %s2 = inlined_call_operand.vmem [shape: f32[1,256], index: 2, kind: input, shape index: {}]
  %s3 = inlined_call_operand.vmem [shape: f32[1,256], index: 3, kind: input, shape index: {}]
  %s4 = inlined_call_operand.hbm [shape: f32[2,1,256], index: 4, kind: output, shape index: {}]
  %s5 = sld [smem:[#allocation0]]
  $region57: #{tpu_custom_call.1} parent=0
    _
  %s7 = ssub.s32 1, %s5
  %s8 = scalar_select 0, %s7, %s5
  $region1: #{tpu_custom_call.1} parent=0
    #allocation3 [shape = 'u8[2048]{0}', space=vmem, size = 0x800, scoped, tag = 'output window, operand 0']
    #allocation4 [shape = 's32[2]{0}', space=sflag, size = 0x8, scoped, tag = 'scoped memory for tpu_custom_call.1']
    %9 = vsyncpa [#allocation4], 0
    %s10 = scalar_lea.sflag [#allocation4], 1
    %11 = vsyncpa %s10, 0
    loop: start=0, step=1, limit=6
    $region2: #{tpu_custom_call.1} parent=1 // loop_pre_header
      _
    $region3: #{tpu_custom_call.1} parent=1 // loop_header
      %s13 = sphi 0, %s17
      %p14 = scmp.ge.s32.totalorder %s13, 6
      %s20 = sphi 0, %s32
      %s21 = sphi 0, %s28
      %s22 = sphi 0, %s20
      %s23 = sphi 0, %s21
      %s24 = sphi 0, %s22
      %s25 = sphi 0, %s23
      %s37 = sphi 0, %s39
      %s40 = sphi 0, %s37
      %s41 = sphi 0, %s40
      %s57 = sphi 0, %s41
      %s61 = sphi 0, %s61
      %s63 = sphi 0, %s61
      %s64 = sphi 0, %s63
      %s78 = sphi 0, %s64
      %s82 = sphi 0, %s82
      %s84 = sphi 0, %s82
      %s85 = sphi 0, %s84
      %s99 = sphi 0, %s85
      %s103 = sphi 0, %s103
      %s105 = sphi 0, %s103
      %s106 = sphi 0, %s105
      %s120 = sphi 0, %s106
      %s126 = sphi 0, %s128
      %s129 = sphi 0, %s126
      %s130 = sphi 0, %s129
      %s146 = sphi 0, %s130
    $region4: #{tpu_custom_call.1} parent=1 // loop_header_branch
      %16 = sbr.rel (%p14) target = $region8
    $region5: #{tpu_custom_call.1} parent=1 // loop_body
      %s18 = ssub.s32 %s13, 1
      %s19 = ssub.s32 %s13, 2
      %s26 = sadd.s32 1, %s21
      %p27 = scmp.ge.s32.totalorder %s26, 2
      %s28 = scalar_select %p27, 0, %s26
      %s29 = sadd.s32 1, %s20
      %s30 = scalar_select %p27, %s29, %s20
      %p31 = scmp.ge.s32.totalorder %s30, 2
      %s32 = scalar_select %p31, 0, %s30
      %s33 = ssub.s32 %s20, %s32
      %s34 = ssub.s32 %s21, %s28
      %s35 = sor.u32 %s33, %s34
      %p36 = scmp.eq.s32.totalorder %s35, 0
      %s38 = sadd.s32 %s37, 1
      %s39 = scalar_select %p36, %s37, %s38
      %p42 = pneg %p36
      %p43 = scmp.eq.s32.totalorder %s13, 3
      %p44 = por %p42, %p43
      %p45 = scmp.ne.s32.totalorder %s37, %s40
      %p46 = scmp.eq.s32.totalorder %s13, 0
      %p47 = por %p45, %p46
      %p48 = scmp.ne.s32.totalorder %s37, %s40
      %p49 = scmp.eq.s32.totalorder %s18, 3
      %p50 = por %p48, %p49
      %p51 = scmp.ne.s32.totalorder %s40, %s41
      %p52 = scmp.eq.s32.totalorder %s18, 0
      %p53 = por %p51, %p52
      %p54 = scmp.ne.s32.totalorder %s40, %s41
      %p55 = scmp.eq.s32.totalorder %s19, 3
      %p56 = por %p54, %p55
      %p58 = scmp.ne.s32.totalorder %s41, %s57
      %p59 = scmp.eq.s32.totalorder %s19, 0
      %p60 = por %p58, %p59
      %s62 = sadd.s32 %s61, 1
      %p65 = scmp.eq.s32.totalorder %s13, 3
      %p66 = scmp.ne.s32.totalorder %s61, %s63
      %p67 = scmp.eq.s32.totalorder %s13, 0
      %p68 = por %p66, %p67
      %p69 = scmp.ne.s32.totalorder %s61, %s63
      %p70 = scmp.eq.s32.totalorder %s18, 3
      %p71 = por %p69, %p70
      %p72 = scmp.ne.s32.totalorder %s63, %s64
      %p73 = scmp.eq.s32.totalorder %s18, 0
      %p74 = por %p72, %p73
      %p75 = scmp.ne.s32.totalorder %s63, %s64
      %p76 = scmp.eq.s32.totalorder %s19, 3
      %p77 = por %p75, %p76
      %p79 = scmp.ne.s32.totalorder %s64, %s78
      %p80 = scmp.eq.s32.totalorder %s19, 0
      %p81 = por %p79, %p80
      %s83 = sadd.s32 %s82, 1
      %p86 = scmp.eq.s32.totalorder %s13, 3
      %p87 = scmp.ne.s32.totalorder %s82, %s84
      %p88 = scmp.eq.s32.totalorder %s13, 0
      %p89 = por %p87, %p88
      %p90 = scmp.ne.s32.totalorder %s82, %s84
      %p91 = scmp.eq.s32.totalorder %s18, 3
      %p92 = por %p90, %p91
      %p93 = scmp.ne.s32.totalorder %s84, %s85
      %p94 = scmp.eq.s32.totalorder %s18, 0
      %p95 = por %p93, %p94
      %p96 = scmp.ne.s32.totalorder %s84, %s85
      %p97 = scmp.eq.s32.totalorder %s19, 3
      %p98 = por %p96, %p97
      %p100 = scmp.ne.s32.totalorder %s85, %s99
      %p101 = scmp.eq.s32.totalorder %s19, 0
      %p102 = por %p100, %p101
      %s104 = sadd.s32 %s103, 1
      %p107 = scmp.eq.s32.totalorder %s13, 3
      %p108 = scmp.ne.s32.totalorder %s103, %s105
      %p109 = scmp.eq.s32.totalorder %s13, 0
      %p110 = por %p108, %p109
      %p111 = scmp.ne.s32.totalorder %s103, %s105
      %p112 = scmp.eq.s32.totalorder %s18, 3
      %p113 = por %p111, %p112
      %p114 = scmp.ne.s32.totalorder %s105, %s106
      %p115 = scmp.eq.s32.totalorder %s18, 0
      %p116 = por %p114, %p115
      %p117 = scmp.ne.s32.totalorder %s105, %s106
      %p118 = scmp.eq.s32.totalorder %s19, 3
      %p119 = por %p117, %p118
      %p121 = scmp.ne.s32.totalorder %s106, %s120
      %p122 = scmp.eq.s32.totalorder %s19, 0
      %p123 = por %p121, %p122
      %s124 = ssub.s32 %s20, %s32
      %p125 = scmp.eq.s32.totalorder %s124, 0
      %s127 = sadd.s32 %s126, 1
      %s128 = scalar_select %p125, %s126, %s127
      %p131 = pneg %p125
      %p132 = scmp.eq.s32.totalorder %s13, 3
      %p133 = por %p131, %p132
      %p134 = scmp.ne.s32.totalorder %s126, %s129
      %p135 = scmp.eq.s32.totalorder %s13, 0
      %p136 = por %p134, %p135
      %p137 = scmp.ne.s32.totalorder %s126, %s129
      %p138 = scmp.eq.s32.totalorder %s18, 3
      %p139 = por %p137, %p138
      %p140 = scmp.ne.s32.totalorder %s129, %s130
      %p141 = scmp.eq.s32.totalorder %s18, 0
      %p142 = por %p140, %p141
      %p143 = scmp.ne.s32.totalorder %s129, %s130
      %p144 = scmp.eq.s32.totalorder %s19, 3
      %p145 = por %p143, %p144
      %p147 = scmp.ne.s32.totalorder %s130, %s146
      %p148 = scmp.eq.s32.totalorder %s19, 0
      %p149 = por %p147, %p148
      %p150 = scmp.le.s32.totalorder 1, %s13
      %p151 = scmp.lt.s32.totalorder %s13, 5
      %p152 = pnand %p150, %p151
      %p153 = pneg %p152
      // Predicated region
      $region9: #{tpu_custom_call.1} parent=5 // pred_check
        _
      $region10: #{tpu_custom_call.1} parent=5 // pred_check_branch
        %155 = sbr.rel (%p152) target = $region12
      $region11: #{tpu_custom_call.1} parent=5 // pred_region
        %s156 = ssub.s32 %s13, 1
        // Predicated region
        $region13: #{tpu_custom_call.1} parent=11 // pred_check
          %p157 = pneg %p74
        $region14: #{tpu_custom_call.1} parent=11 // pred_check_branch
          %159 = sbr.rel (%p157) target = $region16
        $region15: #{tpu_custom_call.1} parent=11 // pred_region
          _
        $region16: #{tpu_custom_call.1} parent=11 // pred_fallthru
          _
        // Predicated region
        $region17: #{tpu_custom_call.1} parent=11 // pred_check
          %p160 = pneg %p95
        $region18: #{tpu_custom_call.1} parent=11 // pred_check_branch
          %162 = sbr.rel (%p160) target = $region20
        $region19: #{tpu_custom_call.1} parent=11 // pred_region
          _
        $region20: #{tpu_custom_call.1} parent=11 // pred_fallthru
          _
        // Predicated region
        $region21: #{tpu_custom_call.1} parent=11 // pred_check
          %p163 = pneg %p116
        $region22: #{tpu_custom_call.1} parent=11 // pred_check_branch
          %165 = sbr.rel (%p163) target = $region24
        $region23: #{tpu_custom_call.1} parent=11 // pred_region
          _
        $region24: #{tpu_custom_call.1} parent=11 // pred_fallthru
          _
      $region12: #{tpu_custom_call.1} parent=5 // pred_fallthru
        _
      %p166 = scmp.lt.s32.totalorder %s13, 4
      // Predicated region
      $region25: #{tpu_custom_call.1} parent=5 // pred_check
        %p167 = pneg %p166
      $region26: #{tpu_custom_call.1} parent=5 // pred_check_branch
        %169 = sbr.rel (%p167) target = $region28
      $region27: #{tpu_custom_call.1} parent=5 // pred_region
        // Predicated region
        $region29: #{tpu_custom_call.1} parent=27 // pred_check
          %p170 = pneg %p47
        $region30: #{tpu_custom_call.1} parent=27 // pred_check_branch
          %172 = sbr.rel (%p170) target = $region32
        $region31: #{tpu_custom_call.1} parent=27 // pred_region
          %s173 = smul.u32 8, %s21
          %p174 = scmp.lt.s32.totalorder %s20, 1
          %s175 = scalar_select %p174, %s20, 1
          %p176 = scmp.lt.s32.totalorder %s173, 15
          %s177 = scalar_select %p176, %s173, 15
          %s178 = smul.addr %s177, 2
          %s179 = smul.addr %s175, 32
          %s180 = sadd.s32 %s178, %s179
          %s181 = smul.addr %s180, 8
          %s182 = scalar_lea.vmem %s0, %s181
          %s183 = smul.u32 8, %s21
        $region32: #{tpu_custom_call.1} parent=27 // pred_fallthru
          _
      $region28: #{tpu_custom_call.1} parent=5 // pred_fallthru
        _
      %p184 = scmp.le.s32.totalorder 1, %s13
      %p185 = scmp.lt.s32.totalorder %s13, 5
      %p186 = pnand %p184, %p185
      %p187 = pneg %p186
      // Predicated region
      $region33: #{tpu_custom_call.1} parent=5 // pred_check
        _
      $region34: #{tpu_custom_call.1} parent=5 // pred_check_branch
        %189 = sbr.rel (%p186) target = $region36
      $region35: #{tpu_custom_call.1} parent=5 // pred_region
        %s190 = ssub.s32 %s13, 1
        %s191 = smul.u32 8, %s23
        %p192 = scmp.lt.s32.totalorder %s22, 1
        %s193 = scalar_select %p192, %s22, 1
        %p194 = scmp.lt.s32.totalorder %s191, 15
        %s195 = scalar_select %p194, %s191, 15
        %s196 = smul.addr %s195, 2
        %s197 = smul.addr %s193, 32
        %s198 = sadd.s32 %s196, %s197
        %s199 = smul.addr %s198, 8
        %s200 = scalar_lea.vmem %s0, %s199
        %p201 = pneg %p53
        %p202 = pneg %p50
        %p203 = pneg %p74
        %p204 = pneg %p71
        %p205 = pneg %p95
        %p206 = pneg %p92
        %p207 = pneg %p116
        %p208 = pneg %p113
        %p209 = pneg %p142
        %p210 = pneg %p139
        %s211 = sand.u32 %s129, 1
        %s212 = scalar_lea.sflag [#allocation4], %s211
        %s213 = sand.u32 %s129, 1
        %s214 = smul.addr %s213, 2
        %s215 = scalar_lea.vmem [#allocation3], %s214
        %s216 = smul.u32 8, %s23
        %p217 = scmp.lt.s32.totalorder %s22, 1
        %s218 = scalar_select %p217, %s22, 1
        %p219 = scmp.lt.s32.totalorder %s216, 15
        %s220 = scalar_select %p219, %s216, 15
        %s221 = smul.addr %s220, 2
        %s222 = smul.addr %s218, 32
        %s223 = sadd.s32 %s221, %s222
        %s224 = smul.addr %s223, 8
        %s225 = scalar_lea.vmem %s0, %s224
        %s226 = smul.u32 8, %s23
        %p228 = scmp.eq.s32.totalorder %s23, 0
        // Predicated region
        $region37: #{tpu_custom_call.1} parent=35 // pred_check
          %p229 = pneg %p228
        $region38: #{tpu_custom_call.1} parent=35 // pred_check_branch
          %231 = sbr.rel (%p229) target = $region40
        $region39: #{tpu_custom_call.1} parent=35 // pred_region
          %vm232 = vcmask 57344
          %233 = vst.msk [vmem:[#allocation2] sm:$0x1] %vm232, 0.0
        $region40: #{tpu_custom_call.1} parent=35 // pred_fallthru
          _
        %v234 = vld [vmem:[%s225] sm:$0xff]
        %v235 = vld [vmem:[%s225 + $0x8] sm:$0xff]
        %v236 = vld [vmem:[%s225 + $0x10] sm:$0xff]
        %v237 = vld [vmem:[%s225 + $0x18] sm:$0xff]
        %v238 = vld [vmem:[%s225 + $0x20] sm:$0xff]
        %v239 = vld [vmem:[%s225 + $0x28] sm:$0xff]
        %v240 = vld [vmem:[%s225 + $0x30] sm:$0xff]
        %v241 = vld [vmem:[%s225 + $0x38] sm:$0xff]
        %v242 = vld [vmem:[%s225 + $0x40] sm:$0xff]
        %v243 = vld [vmem:[%s225 + $0x48] sm:$0xff]
        %v244 = vld [vmem:[%s225 + $0x50] sm:$0xff]
        %v245 = vld [vmem:[%s225 + $0x58] sm:$0xff]
        %v246 = vld [vmem:[%s225 + $0x60] sm:$0xff]
        %v247 = vld [vmem:[%s225 + $0x68] sm:$0xff]
        %v248 = vld [vmem:[%s225 + $0x70] sm:$0xff]
        %v249 = vld [vmem:[%s225 + $0x78] sm:$0xff]
        %v250 = vld [vmem:[#allocation2] sm:$0x1]
        %vm251 = vcmask 64512
        %v252 = vsel %vm251, %v234, 0.0
        %v253 = vsel %vm251, %v235, 0.0
        %v254 = vadd.f32 %v252, %v253
        %v255 = vsel %vm251, %v236, 0.0
        %v256 = vadd.f32 %v254, %v255
        %v257 = vsel %vm251, %v237, 0.0
        %v258 = vadd.f32 %v256, %v257
        %v259 = vsel %vm251, %v238, 0.0
        %v260 = vadd.f32 %v258, %v259
        %v261 = vsel %vm251, %v239, 0.0
        %v262 = vadd.f32 %v260, %v261
        %v263 = vsel %vm251, %v240, 0.0
        %v264 = vadd.f32 %v262, %v263
        %v265 = vsel %vm251, %v241, 0.0
        %v266 = vadd.f32 %v264, %v265
        %v267 = vsel %vm251, %v242, 0.0
        %v268 = vadd.f32 %v266, %v267
        %v269 = vsel %vm251, %v243, 0.0
        %v270 = vadd.f32 %v268, %v269
        %v271 = vsel %vm251, %v244, 0.0
        %v272 = vadd.f32 %v270, %v271
        %v273 = vsel %vm251, %v245, 0.0
        %v274 = vadd.f32 %v272, %v273
        %v275 = vsel %vm251, %v246, 0.0
        %v276 = vadd.f32 %v274, %v275
        %v277 = vsel %vm251, %v247, 0.0
        %v278 = vadd.f32 %v276, %v277
        %v279 = vsel %vm251, %v248, 0.0
        %v280 = vadd.f32 %v278, %v279
        %v281 = vsel %vm251, %v249, 0.0
        %v282 = vadd.f32 %v280, %v281
        %v283 = vrot.slane %v282, 4
        %v284 = vadd.f32 %v282, %v283
        %v285 = vrot.slane %v284, 2
        %v286 = vadd.f32 %v284, %v285
        %v287 = vrot.slane %v286, 1
        %v288 = vadd.f32 %v286, %v287
        %v289 = vadd.f32 %v250, %v288
        %vm290 = vcmask 57344
        %291 = vst.msk [vmem:[#allocation2] sm:$0x1] %vm290, %v289
        %p292 = scmp.eq.s32.totalorder %s23, 1
        // Predicated region
        $region41: #{tpu_custom_call.1} parent=35 // pred_check
          %p293 = pneg %p292
        $region42: #{tpu_custom_call.1} parent=35 // pred_check_branch
          %295 = sbr.rel (%p293) target = $region44
        $region43: #{tpu_custom_call.1} parent=35 // pred_region
          %v296 = vld [vmem:[#allocation2] sm:$0x1]
          %v297 = vmul.f32 %v296, 0.00390625
          %v298 = vpack.c.bf16 %v297, %v297
          %v299 = vld [vmem:[%s1] sm:$0xff]
          %v301 = vunpack.c.l.b16 %v299
          %v302 = vunpack.c.h.b16 %v299
          %v303 = vpack.c.b16 %v301, %v301
          %v304 = vpack.c.b16 %v302, %v302
          %v306 = vsel %vm251, %v298, 0
          %vm308 = vcmask 1043456
          %v310 = vsel %vm308, %v303, 0
          %v313 = vsel %vm308, %v304, 0
          %315 = vmatprep.subr.bf16.mxu0 %v313
          %316 = vmatpush1.bf16.msra.mxu0 %v310
          %317 = vmatprep.subr.bf16.mxu0 0
          %318 = vmatpush1.bf16.msra.mxu0 0
          %319 = vmatprep.subr.bf16.mxu0 0
          %320 = vmatpush1.bf16.msra.mxu0 0
          %321 = vmatprep.subr.bf16.mxu0 0
          %322 = vmatpush1.bf16.msra.mxu0 0
          %323 = vmatprep.subr.bf16.mxu0 0
          %324 = vmatpush1.bf16.msra.mxu0 0
          %325 = vmatprep.subr.bf16.mxu0 0
          %326 = vmatpush1.bf16.msra.mxu0 0
          %327 = vmatprep.subr.bf16.mxu0 0
          %328 = vmatpush1.bf16.msra.mxu0 0
          %329 = vmatprep.subr.bf16.mxu0 0
          %330 = vmatpush1.bf16.msra.mxu0 0
          %331 = vmatprep.subr.bf16.mxu0 0
          %332 = vmatpush1.bf16.msra.mxu0 0
          %333 = vmatprep.subr.bf16.mxu0 0
          %334 = vmatpush1.bf16.msra.mxu0 0
          %335 = vmatprep.subr.bf16.mxu0 0
          %336 = vmatpush1.bf16.msra.mxu0 0
          %337 = vmatprep.subr.bf16.mxu0 0
          %338 = vmatpush1.bf16.msra.mxu0 0
          %339 = vmatprep.subr.bf16.mxu0 0
          %340 = vmatpush1.bf16.msra.mxu0 0
          %341 = vmatprep.subr.bf16.mxu0 0
          %342 = vmatpush1.bf16.msra.mxu0 0
          %343 = vmatprep.subr.bf16.mxu0 0
          %344 = vmatpush1.bf16.msra.mxu0 0
          %345 = vmatprep.subr.bf16.mxu0 0
          %346 = vmatpush1.bf16.msra.mxu0 0
          %347 = vmatprep.mubr.bf16.mxu0 0
          %348 = vmatmul.mubr.bf16.gmra.mrb[0].mxu0 %v306
          %v349 = vpop.f32.mrb[0].mxu0
          %v350 = vadd.f32 0.0, %v349
          %v351 = vpop.f32.mrb[0].mxu0
          %v352 = vadd.f32 0.0, %v351
          %v353 = vpop.f32.mrb[0].mxu0
          %v354 = vpop.f32.mrb[0].mxu0
          %355 = vdwg.mxu0
          %v356 = vld [vmem:[%s2] sm:$0x3]
          %v358 = vlaneseq
          %v359 = vshrl.u32 %v358, 7
          %v360 = vsub.s32 0, %v359
          %v361 = vrot.slane %v356, %v360
          %v362 = vlaneseq
          %v363 = vshrl.u32 %v362, 7
          %v364 = vsub.s32 1, %v363
          %v365 = vrot.slane %v356, %v364
          %v368 = vmul.f32 %v350, %v361
          %v369 = vmul.f32 %v352, %v365
          %v370 = vld [vmem:[%s3] sm:$0x3]
          %v372 = vlaneseq
          %v373 = vshrl.u32 %v372, 7
          %v374 = vsub.s32 0, %v373
          %v375 = vrot.slane %v370, %v374
          %v376 = vlaneseq
          %v377 = vshrl.u32 %v376, 7
          %v378 = vsub.s32 1, %v377
          %v379 = vrot.slane %v370, %v378
          %v382 = vadd.f32 %v368, %v375
          %v383 = vadd.f32 %v369, %v379
          %v384 = vmax.f32 %v382, 0.0
          %v385 = vmax.f32 %v383, 0.0
          %v388 = vcombine.low %v384, %v385
          %v390 = vunpack.c.l.s4 1966171168
          %v391 = vunpack.c.0.s8 %v390
          %v392 = vlaneseq
          %v393 = vshrl.u32 %v392, 7
          %v394 = vsub.s32 %v391, %v393
          %v395 = vrot.slane %v388, %v394
          %v397 = vunpack.c.l.s4 1966171168
          %v398 = vunpack.c.0.s8 %v397
          %v399 = vlaneseq
          %v400 = vshrl.u32 %v399, 7
          %v401 = vsub.s32 %v398, %v400
          %v402 = vrot.slane %v395, %v401
          %v404 = vlaneseq
          %vm405 = vcmp.ge.s32.totalorder %v404, 0
          %vm406 = vcmp.lt.s32.totalorder %v404, 256
          %vm407 = vmand %vm405, %vm406
          %408 = vst.msk [vmem:[%s215] sm:$0x3] %vm407, %v402
        $region44: #{tpu_custom_call.1} parent=35 // pred_fallthru
          _
        %s409 = sand.u32 %s129, 1
        %s410 = scalar_lea.sflag [#allocation4], %s409
        %s411 = sand.u32 %s129, 1
        %s412 = smul.addr %s411, 2
        %s413 = scalar_lea.vmem [#allocation3], %s412
        // Predicated region
        $region45: #{tpu_custom_call.1} parent=35 // pred_check
          %p414 = pneg %p139
        $region46: #{tpu_custom_call.1} parent=35 // pred_check_branch
          %416 = sbr.rel (%p414) target = $region48
        $region47: #{tpu_custom_call.1} parent=35 // pred_region
          %s418 = ssub.s32 32, 32
          %419 = vsyncadd %s410, %s418
          %s420 = smul.addr %s22, 2
          %s421 = smul.addr %s420, 16
          %s422 = scalar_lea.hbm %s4, %s421
          %s424 = sshll.u32 %s413, 4
          %s425 = int_to_ptr.vmem [resolvable:$true] %s424
          %427 = dma.vmem_to_hbm [thread:$0]  %s425, 32, %s422, %s410
        $region48: #{tpu_custom_call.1} parent=35 // pred_fallthru
          _
      $region36: #{tpu_custom_call.1} parent=5 // pred_fallthru
        _
      %p428 = scmp.le.s32.totalorder 2, %s13
      // Predicated region
      $region49: #{tpu_custom_call.1} parent=5 // pred_check
        %p429 = pneg %p428
      $region50: #{tpu_custom_call.1} parent=5 // pred_check_branch
        %431 = sbr.rel (%p429) target = $region52
      $region51: #{tpu_custom_call.1} parent=5 // pred_region
        %s432 = ssub.s32 %s13, 2
        // Predicated region
        $region53: #{tpu_custom_call.1} parent=51 // pred_check
          %p433 = pneg %p145
        $region54: #{tpu_custom_call.1} parent=51 // pred_check_branch
          %435 = sbr.rel (%p433) target = $region56
        $region55: #{tpu_custom_call.1} parent=51 // pred_region
          %s436 = sand.u32 %s130, 1
          %s437 = scalar_lea.sflag [#allocation4], %s436
          %s438 = sand.u32 %s130, 1
          %s439 = smul.addr %s438, 2
          %s440 = scalar_lea.vmem [#allocation3], %s439
          %441 = dma.done %s437, 32
        $region56: #{tpu_custom_call.1} parent=51 // pred_fallthru
          _
      $region52: #{tpu_custom_call.1} parent=5 // pred_fallthru
        _
    $region6: #{tpu_custom_call.1} parent=1 // loop_footer
      %s17 = sadd.s32 1, %s13
    $region7: #{tpu_custom_call.1} parent=1 // loop_footer_branch
      %12 = sbr.rel target = $region3
    $region8: #{tpu_custom_call.1} parent=1 // loop_exit
      _
    %442 = vsyncpa [#allocation4], 1
    %s443 = scalar_lea.sflag [#allocation4], 1
    %444 = vsyncpa %s443, 1

</llo_original>
